<compile_context>
chip_gen: v5e
topology: v5e:2x2
jax: 0.10.0
libtpu: 0.0.40
codegen_flags: <defaults>
</compile_context>

<pallas_src>
import functools

import jax
import jax.numpy as jnp
from jax.experimental import pallas as pl
from jax.experimental.pallas import tpu as pltpu

_LANE = 128
_SUBLANE = 8


def _round_up(x, m):
    return (x + m - 1) // m * m


def _pad_to(a, shape):
    return jnp.pad(a, [(0, t - s) for s, t in zip(a.shape, shape)])


def _make_kernel(n_layers: int):
    """mask-folded Linear -> [Linear+ReLU]*n_layers -> Linear, one batch tile per call."""

    def kernel(x_ref, *refs):
        # refs = (w0, b0, ..., w_{L-1}, b_{L-1}, w_out, b_out, out)
        param_refs = refs[:-1]
        out_ref = refs[-1]

        h = x_ref[...]                                            # bf16 (TILE_B, D_in_p)
        for i in range(n_layers):
            w = param_refs[2 * i][...]                            # bf16 (d_i_p, n_units_p)
            b = param_refs[2 * i + 1][...]                        # f32  (1, n_units_p)
            z = jnp.dot(h, w, preferred_element_type=jnp.float32) + b
            h = jnp.maximum(z, 0.0).astype(jnp.bfloat16)          # ReLU (+ identity dropout)

        w_out = param_refs[2 * n_layers][...]                     # bf16 (n_units_p, n_out_p)
        b_out = param_refs[2 * n_layers + 1][...]                 # f32  (1, n_out_p)
        out_ref[...] = jnp.dot(h, w_out,
                               preferred_element_type=jnp.float32) + b_out

    return kernel


def _pick_tile_b(B, d_in_p, n_units_p, n_out_p, weight_bytes,
                 max_tile=1024, vmem_budget=24 << 20):
    """Largest batch tile (multiple of 8, <= max_tile) whose streamed + resident VMEM
    footprint stays under a conservative budget (default scoped limit is 32 MiB)."""
    # Double-buffered bf16 input tile + double-buffered f32 output tile + f32 intermediates.
    per_row = 2 * 2 * d_in_p + 2 * 4 * n_out_p + 4 * n_units_p
    tile = max_tile
    while tile > _SUBLANE and weight_bytes + tile * per_row > vmem_budget:
        tile //= 2
    tile = max(tile, _SUBLANE)
    return min(tile, _round_up(B, _SUBLANE))


def fully_connected_tsl_forward(x, mask, layer_params, out_w, out_b,
                                pred_len, n_features_out, tile_b=None):
    """x: (B, seq_len, n_features_in) float32. Returns (B, pred_len, n_features_out) f32."""
    B = x.shape[0]
    x2d = x.reshape(B, -1).astype(jnp.float32)                    # (B, D_in)
    d_in = x2d.shape[1]
    n_layers = len(layer_params)
    n_units = layer_params[0][0].shape[1]
    n_out_flat = pred_len * n_features_out

    # Lane-dense padded sizes (multiples of 128) and sublane-dense batch tiling.
    d_in_p = _round_up(d_in, _LANE)
    n_units_p = _round_up(n_units, _LANE)
    n_out_p = _round_up(n_out_flat, _LANE)

    # Fold TimeSelectionLayer into the first weight matrix:
    #   (x * sigmoid(m)) @ W0 == x @ (diag(sigmoid(m)) @ W0)
    s = jax.nn.sigmoid(mask.reshape(-1).astype(jnp.float32))      # (D_in,)
    w0_folded = layer_params[0][0].astype(jnp.float32) * s[:, None]

    # Zero-pad parameters; weights -> bf16 (MXU), biases -> f32 (accumulator dtype).
    # Zero padding is exact: padded x cols are 0, padded W rows/cols and bias entries are 0,
    # so padded activation columns stay 0 through ReLU and never contaminate real outputs.
    flat_params = []
    for i in range(n_layers):
        w = w0_folded if i == 0 else layer_params[i][0].astype(jnp.float32)
        b = layer_params[i][1].astype(jnp.float32).reshape(1, -1)
        in_p = d_in_p if i == 0 else n_units_p
        flat_params.append(_pad_to(w, (in_p, n_units_p)).astype(jnp.bfloat16))
        flat_params.append(_pad_to(b, (1, n_units_p)))
    flat_params.append(_pad_to(out_w.astype(jnp.float32),
                               (n_units_p, n_out_p)).astype(jnp.bfloat16))
    flat_params.append(_pad_to(out_b.astype(jnp.float32).reshape(1, -1), (1, n_out_p)))

    weight_bytes = sum(int(p.size) * p.dtype.itemsize for p in flat_params)
    if tile_b is None:
        tile_b = _pick_tile_b(B, d_in_p, n_units_p, n_out_p, weight_bytes)
    else:
        tile_b = min(_round_up(tile_b, _SUBLANE), _round_up(B, _SUBLANE))
    b_p = _round_up(B, tile_b)

    x_pad = _pad_to(x2d, (b_p, d_in_p)).astype(jnp.bfloat16)      # (B_p, D_in_p)

    grid = (b_p // tile_b,)
    in_specs = [pl.BlockSpec((tile_b, d_in_p), lambda i: (i, 0))]  # stream batch tiles
    for p in flat_params:                                          # params stay resident
        in_specs.append(pl.BlockSpec(p.shape, lambda i: (0, 0)))
    out_specs = pl.BlockSpec((tile_b, n_out_p), lambda i: (i, 0))

    flops = 2 * b_p * (d_in_p * n_units_p
                       + (n_layers - 1) * n_units_p * n_units_p
                       + n_units_p * n_out_p)
    bytes_accessed = (int(x_pad.size) * 2
                      + weight_bytes
                      + b_p * n_out_p * 4)

    out_pad = pl.pallas_call(
        _make_kernel(n_layers),
        out_shape=jax.ShapeDtypeStruct((b_p, n_out_p), jnp.float32),
        grid=grid,
        in_specs=in_specs,
        out_specs=out_specs,
        compiler_params=pltpu.CompilerParams(dimension_semantics=("parallel",)),
        cost_estimate=pl.CostEstimate(flops=flops,
                                      bytes_accessed=bytes_accessed,
                                      transcendentals=0),
    )(x_pad, *flat_params)

    return out_pad[:B, :n_out_flat].reshape(B, pred_len, n_features_out)


def _reference_forward(x, mask, layer_params, out_w, out_b, pred_len, n_features_out):
    """Pure-JAX f32 reference for correctness check."""
    B = x.shape[0]
    h = x.reshape(B, -1) * jax.nn.sigmoid(mask)
    for (w, b) in layer_params:
        h = jnp.maximum(h @ w + b, 0.0)
    out = h @ out_w + out_b
    return out.reshape(B, pred_len, n_features_out)


if __name__ == "__main__":
    # Small shapes consistent with the module's __init__.
    B = 2
    seq_len = 8
    n_features_in = 4
    n_features_out = 3
    pred_len = 4
    n_layers = 2
    n_units = 32

    d_in = seq_len * n_features_in           # 32
    n_out_flat = pred_len * n_features_out   # 12

    key = jax.random.PRNGKey(0)
    keys = jax.random.split(key, 4 + 2 * n_layers)

    x = jax.random.normal(keys[0], (B, seq_len, n_features_in), dtype=jnp.float32)
    mask = jax.random.normal(keys[1], (1, d_in), dtype=jnp.float32) * 0.5

    layer_params = []
    fan_in = d_in
    for i in range(n_layers):
        kw, kb = keys[2 + 2 * i], keys[3 + 2 * i]
        bound = 1.0 / float(jnp.sqrt(fan_in))
        w = jax.random.uniform(kw, (fan_in, n_units), jnp.float32, -bound, bound)
        b = jax.random.uniform(kb, (1, n_units), jnp.float32, -bound, bound)
        layer_params.append((w, b))
        fan_in = n_units

    kw, kb = keys[2 + 2 * n_layers], keys[3 + 2 * n_layers]
    bound = 1.0 / float(jnp.sqrt(n_units))
    out_w = jax.random.uniform(kw, (n_units, n_out_flat), jnp.float32, -bound, bound)
    out_b = jax.random.uniform(kb, (1, n_out_flat), jnp.float32, -bound, bound)

    fwd = jax.jit(functools.partial(fully_connected_tsl_forward,
                                    pred_len=pred_len,
                                    n_features_out=n_features_out))
    y = fwd(x, mask, layer_params, out_w, out_b)
    y = jax.block_until_ready(y)

    y_ref = _reference_forward(x, mask, layer_params, out_w, out_b,
                               pred_len, n_features_out)
    assert y.shape == (B, pred_len, n_features_out)
    # bf16 matmul operands with f32 accumulation -> loosened tolerance vs f32 reference.
    assert jnp.allclose(y, y_ref, atol=5e-2, rtol=5e-2), "mismatch vs JAX reference"

    print("KERNEL_OK")
</pallas_src>

<mosaic_0001>
module attributes {stable_mosaic.version = 11 : i64} {
  func.func @kernel(%arg0: i32, %arg1: memref<8x128xbf16, #tpu.memory_space<vmem>>, %arg2: memref<128x128xbf16, #tpu.memory_space<vmem>>, %arg3: memref<1x128xf32, #tpu.memory_space<vmem>>, %arg4: memref<128x128xbf16, #tpu.memory_space<vmem>>, %arg5: memref<1x128xf32, #tpu.memory_space<vmem>>, %arg6: memref<128x128xbf16, #tpu.memory_space<vmem>>, %arg7: memref<1x128xf32, #tpu.memory_space<vmem>>, %arg8: memref<8x128xf32, #tpu.memory_space<vmem>>) attributes {dimension_semantics = [#tpu.dimension_semantics<parallel>], iteration_bounds = array<i64: 1>, scalar_prefetch = 0 : i64, scratch_operands = 0 : i64, tpu.core_type = #tpu.core_type<tc>, window_params = [{transform_indices = @transform_0, window_bounds = array<i64: 8, 128>}, {pipeline_mode = #tpu.pipeline_mode<synchronous>, transform_indices = @transform_1, window_bounds = array<i64: 128, 128>}, {pipeline_mode = #tpu.pipeline_mode<synchronous>, transform_indices = @transform_2, window_bounds = array<i64: 1, 128>}, {pipeline_mode = #tpu.pipeline_mode<synchronous>, transform_indices = @transform_3, window_bounds = array<i64: 128, 128>}, {pipeline_mode = #tpu.pipeline_mode<synchronous>, transform_indices = @transform_4, window_bounds = array<i64: 1, 128>}, {pipeline_mode = #tpu.pipeline_mode<synchronous>, transform_indices = @transform_5, window_bounds = array<i64: 128, 128>}, {pipeline_mode = #tpu.pipeline_mode<synchronous>, transform_indices = @transform_6, window_bounds = array<i64: 1, 128>}, {transform_indices = @transform_7, window_bounds = array<i64: 8, 128>}]} {
    %c0 = arith.constant 0 : index
    %c0_0 = arith.constant 0 : index
    %0 = vector.load %arg1[%c0, %c0_0] : memref<8x128xbf16, #tpu.memory_space<vmem>>, vector<8x128xbf16>
    %c0_1 = arith.constant 0 : index
    %c0_2 = arith.constant 0 : index
    %1 = vector.load %arg2[%c0_1, %c0_2] : memref<128x128xbf16, #tpu.memory_space<vmem>>, vector<128x128xbf16>
    %c0_3 = arith.constant 0 : index
    %c0_4 = arith.constant 0 : index
    %2 = vector.load %arg3[%c0_3, %c0_4] : memref<1x128xf32, #tpu.memory_space<vmem>>, vector<1x128xf32>
    %cst = arith.constant dense<0.000000e+00> : vector<8x128xf32>
    %3 = tpu.matmul %0, %1, %cst {dimension_numbers = #tpu.dot_dimension_numbers<[1], [0], [0], [1], [0, 0, 1, 1], [], []>} : vector<8x128xbf16>, vector<128x128xbf16>, vector<8x128xf32> -> vector<8x128xf32>
    %4 = vector.broadcast %2 : vector<1x128xf32> to vector<8x128xf32>
    %5 = arith.addf %3, %4 : vector<8x128xf32>
    %cst_5 = arith.constant 0.000000e+00 : f32
    %6 = vector.broadcast %cst_5 : f32 to vector<8x128xf32>
    %7 = arith.maximumf %5, %6 : vector<8x128xf32>
    %8 = arith.truncf %7 : vector<8x128xf32> to vector<8x128xbf16>
    %c0_6 = arith.constant 0 : index
    %c0_7 = arith.constant 0 : index
    %9 = vector.load %arg4[%c0_6, %c0_7] : memref<128x128xbf16, #tpu.memory_space<vmem>>, vector<128x128xbf16>
    %c0_8 = arith.constant 0 : index
    %c0_9 = arith.constant 0 : index
    %10 = vector.load %arg5[%c0_8, %c0_9] : memref<1x128xf32, #tpu.memory_space<vmem>>, vector<1x128xf32>
    %cst_10 = arith.constant dense<0.000000e+00> : vector<8x128xf32>
    %11 = tpu.matmul %8, %9, %cst_10 {dimension_numbers = #tpu.dot_dimension_numbers<[1], [0], [0], [1], [0, 0, 1, 1], [], []>} : vector<8x128xbf16>, vector<128x128xbf16>, vector<8x128xf32> -> vector<8x128xf32>
    %12 = vector.broadcast %10 : vector<1x128xf32> to vector<8x128xf32>
    %13 = arith.addf %11, %12 : vector<8x128xf32>
    %cst_11 = arith.constant 0.000000e+00 : f32
    %14 = vector.broadcast %cst_11 : f32 to vector<8x128xf32>
    %15 = arith.maximumf %13, %14 : vector<8x128xf32>
    %16 = arith.truncf %15 : vector<8x128xf32> to vector<8x128xbf16>
    %c0_12 = arith.constant 0 : index
    %c0_13 = arith.constant 0 : index
    %17 = vector.load %arg6[%c0_12, %c0_13] : memref<128x128xbf16, #tpu.memory_space<vmem>>, vector<128x128xbf16>
    %c0_14 = arith.constant 0 : index
    %c0_15 = arith.constant 0 : index
    %18 = vector.load %arg7[%c0_14, %c0_15] : memref<1x128xf32, #tpu.memory_space<vmem>>, vector<1x128xf32>
    %cst_16 = arith.constant dense<0.000000e+00> : vector<8x128xf32>
    %19 = tpu.matmul %16, %17, %cst_16 {dimension_numbers = #tpu.dot_dimension_numbers<[1], [0], [0], [1], [0, 0, 1, 1], [], []>} : vector<8x128xbf16>, vector<128x128xbf16>, vector<8x128xf32> -> vector<8x128xf32>
    %20 = vector.broadcast %18 : vector<1x128xf32> to vector<8x128xf32>
    %21 = arith.addf %19, %20 : vector<8x128xf32>
    %c0_17 = arith.constant 0 : index
    %c0_18 = arith.constant 0 : index
    %22 = vector.load %arg8[%c0_17, %c0_18] : memref<8x128xf32, #tpu.memory_space<vmem>>, vector<8x128xf32>
    tpu.vector_store %arg8[%c0_17, %c0_18], %21 {strides = array<i32>} : memref<8x128xf32, #tpu.memory_space<vmem>>, vector<8x128xf32>,
    return
  }
  func.func @transform_0(%arg0: i32) -> (i32, i32) {
    %c0_i32 = arith.constant 0 : i32
    %c0_i32_0 = arith.constant 0 : i32
    return %arg0, %c0_i32 : i32, i32
  }
  func.func @transform_1(%arg0: i32) -> (i32, i32) {
    %c0_i32 = arith.constant 0 : i32
    %c0_i32_0 = arith.constant 0 : i32
    %c0_i32_1 = arith.constant 0 : i32
    return %c0_i32, %c0_i32_0 : i32, i32
  }
  func.func @transform_2(%arg0: i32) -> (i32, i32) {
    %c0_i32 = arith.constant 0 : i32
    %c0_i32_0 = arith.constant 0 : i32
    %c0_i32_1 = arith.constant 0 : i32
    return %c0_i32, %c0_i32_0 : i32, i32
  }
  func.func @transform_3(%arg0: i32) -> (i32, i32) {
    %c0_i32 = arith.constant 0 : i32
    %c0_i32_0 = arith.constant 0 : i32
    %c0_i32_1 = arith.constant 0 : i32
    return %c0_i32, %c0_i32_0 : i32, i32
  }
  func.func @transform_4(%arg0: i32) -> (i32, i32) {
    %c0_i32 = arith.constant 0 : i32
    %c0_i32_0 = arith.constant 0 : i32
    %c0_i32_1 = arith.constant 0 : i32
    return %c0_i32, %c0_i32_0 : i32, i32
  }
  func.func @transform_5(%arg0: i32) -> (i32, i32) {
    %c0_i32 = arith.constant 0 : i32
    %c0_i32_0 = arith.constant 0 : i32
    %c0_i32_1 = arith.constant 0 : i32
    return %c0_i32, %c0_i32_0 : i32, i32
  }
  func.func @transform_6(%arg0: i32) -> (i32, i32) {
    %c0_i32 = arith.constant 0 : i32
    %c0_i32_0 = arith.constant 0 : i32
    %c0_i32_1 = arith.constant 0 : i32
    return %c0_i32, %c0_i32_0 : i32, i32
  }
  func.func @transform_7(%arg0: i32) -> (i32, i32) {
    %c0_i32 = arith.constant 0 : i32
    %c0_i32_0 = arith.constant 0 : i32
    return %arg0, %c0_i32 : i32, i32
  }
}

</mosaic_0001>

<llo_original>
// kernel: fully_connected_tsl_forward.1
$region0: #{fully_connected_tsl_forward.1}
  #allocation0 [shape = 'u32[]', space=smem, size = 0x4, offset = 0x4, fixed_abs, tag = 'smem constant byte address 0x4 - core index']
  #allocation1 [shape = 'u32[72,128]{1,0:T(1,128)}', space=vmem, size = 0x9000, scoped, tag = 'internal scratch']
  %s0 = inlined_call_operand.vmem [shape: bf16[8,128], index: 0, kind: input, shape index: {}]
  %s1 = inlined_call_operand.vmem [shape: bf16[128,128], index: 1, kind: input, shape index: {}]
  %s2 = inlined_call_operand.vmem [shape: f32[1,128], index: 2, kind: input, shape index: {}]
  %s3 = inlined_call_operand.vmem [shape: bf16[128,128], index: 3, kind: input, shape index: {}]
  %s4 = inlined_call_operand.vmem [shape: f32[1,128], index: 4, kind: input, shape index: {}]
  %s5 = inlined_call_operand.vmem [shape: bf16[128,128], index: 5, kind: input, shape index: {}]
  %s6 = inlined_call_operand.vmem [shape: f32[1,128], index: 6, kind: input, shape index: {}]
  %s7 = inlined_call_operand.vmem [shape: f32[8,128], index: 7, kind: output, shape index: {}]
  %s8 = sld [smem:[#allocation0]]
  $region38: #{fully_connected_tsl_forward.1} parent=0
    _
  %s10 = ssub.s32 1, %s8
  %s11 = scalar_select 0, %s10, %s8
  // Predicated region
  $region2: #{fully_connected_tsl_forward.1} parent=0 // pred_check
    _
  $region3: #{fully_connected_tsl_forward.1} parent=0 // pred_check_branch
    %13 = sbr.rel (0) target = $region5
  $region4: #{fully_connected_tsl_forward.1} parent=0 // pred_region
    _
  $region5: #{fully_connected_tsl_forward.1} parent=0 // pred_fallthru
    _
  // Predicated region
  $region6: #{fully_connected_tsl_forward.1} parent=0 // pred_check
    _
  $region7: #{fully_connected_tsl_forward.1} parent=0 // pred_check_branch
    %15 = sbr.rel (0) target = $region9
  $region8: #{fully_connected_tsl_forward.1} parent=0 // pred_region
    _
  $region9: #{fully_connected_tsl_forward.1} parent=0 // pred_fallthru
    _
  // Predicated region
  $region10: #{fully_connected_tsl_forward.1} parent=0 // pred_check
    _
  $region11: #{fully_connected_tsl_forward.1} parent=0 // pred_check_branch
    %17 = sbr.rel (0) target = $region13
  $region12: #{fully_connected_tsl_forward.1} parent=0 // pred_region
    _
  $region13: #{fully_connected_tsl_forward.1} parent=0 // pred_fallthru
    _
  // Predicated region
  $region14: #{fully_connected_tsl_forward.1} parent=0 // pred_check
    _
  $region15: #{fully_connected_tsl_forward.1} parent=0 // pred_check_branch
    %19 = sbr.rel (0) target = $region17
  $region16: #{fully_connected_tsl_forward.1} parent=0 // pred_region
    _
  $region17: #{fully_connected_tsl_forward.1} parent=0 // pred_fallthru
    _
  // Predicated region
  $region18: #{fully_connected_tsl_forward.1} parent=0 // pred_check
    _
  $region19: #{fully_connected_tsl_forward.1} parent=0 // pred_check_branch
    %21 = sbr.rel (0) target = $region21
  $region20: #{fully_connected_tsl_forward.1} parent=0 // pred_region
    _
  $region21: #{fully_connected_tsl_forward.1} parent=0 // pred_fallthru
    _
  // Predicated region
  $region22: #{fully_connected_tsl_forward.1} parent=0 // pred_check
    _
  $region23: #{fully_connected_tsl_forward.1} parent=0 // pred_check_branch
    %23 = sbr.rel (0) target = $region25
  $region24: #{fully_connected_tsl_forward.1} parent=0 // pred_region
    _
  $region25: #{fully_connected_tsl_forward.1} parent=0 // pred_fallthru
    _
  // Predicated region
  $region26: #{fully_connected_tsl_forward.1} parent=0 // pred_check
    _
  $region27: #{fully_connected_tsl_forward.1} parent=0 // pred_check_branch
    %25 = sbr.rel (0) target = $region29
  $region28: #{fully_connected_tsl_forward.1} parent=0 // pred_region
    _
  $region29: #{fully_connected_tsl_forward.1} parent=0 // pred_fallthru
    _
  %v26 = vld [vmem:[%s0] sm:$0xf]
  %v27 = vld [vmem:[%s1] sm:$0xf]
  %v28 = vld [vmem:[%s1 + $0x4] sm:$0xf]
  %v29 = vld [vmem:[%s1 + $0x8] sm:$0xf]
  %v30 = vld [vmem:[%s1 + $0xc] sm:$0xf]
  %v31 = vld [vmem:[%s1 + $0x10] sm:$0xf]
  %v32 = vld [vmem:[%s1 + $0x14] sm:$0xf]
  %v33 = vld [vmem:[%s1 + $0x18] sm:$0xf]
  %v34 = vld [vmem:[%s1 + $0x1c] sm:$0xf]
  %v35 = vld [vmem:[%s1 + $0x20] sm:$0xf]
  %v36 = vld [vmem:[%s1 + $0x24] sm:$0xf]
  %v37 = vld [vmem:[%s1 + $0x28] sm:$0xf]
  %v38 = vld [vmem:[%s1 + $0x2c] sm:$0xf]
  %v39 = vld [vmem:[%s1 + $0x30] sm:$0xf]
  %v40 = vld [vmem:[%s1 + $0x34] sm:$0xf]
  %v41 = vld [vmem:[%s1 + $0x38] sm:$0xf]
  %v42 = vld [vmem:[%s1 + $0x3c] sm:$0xf]
  %v43 = vld [vmem:[%s2] sm:$0x1]
  %v45 = vperm.slane %v43, 0
  %v63 = vunpack.c.l.b16 %v27
  %v64 = vunpack.c.l.b16 %v28
  %v65 = vunpack.c.l.b16 %v29
  %v66 = vunpack.c.l.b16 %v30
  %v67 = vunpack.c.l.b16 %v31
  %v68 = vunpack.c.l.b16 %v32
  %v69 = vunpack.c.l.b16 %v33
  %v70 = vunpack.c.l.b16 %v34
  %v71 = vunpack.c.l.b16 %v35
  %v72 = vunpack.c.l.b16 %v36
  %v73 = vunpack.c.l.b16 %v37
  %v74 = vunpack.c.l.b16 %v38
  %v75 = vunpack.c.l.b16 %v39
  %v76 = vunpack.c.l.b16 %v40
  %v77 = vunpack.c.l.b16 %v41
  %v78 = vunpack.c.l.b16 %v42
  %v79 = vpack.c.b16 %v64, %v63
  %v80 = vpack.c.b16 %v66, %v65
  %v81 = vpack.c.b16 %v68, %v67
  %v82 = vpack.c.b16 %v70, %v69
  %v83 = vpack.c.b16 %v72, %v71
  %v84 = vpack.c.b16 %v74, %v73
  %v85 = vpack.c.b16 %v76, %v75
  %v86 = vpack.c.b16 %v78, %v77
  %95 = vmatpush.bf16.msra.mxu0 %v86
  %96 = vmatpush.bf16.msra.mxu0 %v85
  %97 = vmatpush.bf16.msra.mxu0 %v84
  %98 = vmatpush.bf16.msra.mxu0 %v83
  %99 = vmatpush.bf16.msra.mxu0 %v82
  %100 = vmatpush.bf16.msra.mxu0 %v81
  %101 = vmatpush.bf16.msra.mxu0 %v80
  %102 = vmatpush.bf16.msra.mxu0 %v79
  %103 = vmatmul.bf16.gmra.mxu0 %v26
  %v104 = vpop.f32.mrf.mxu0
  %v105 = vadd.f32 %v45, %v104
  %v106 = vpop.f32.mrf.mxu0
  %107 = vdwg.mxu0
  %v108 = vmax.f32 %v105, 0.0
  %v109 = vpack.c.bf16 %v108, %v108
  %v110 = vld [vmem:[%s3] sm:$0xf]
  %v111 = vld [vmem:[%s3 + $0x4] sm:$0xf]
  %v112 = vld [vmem:[%s3 + $0x8] sm:$0xf]
  %v113 = vld [vmem:[%s3 + $0xc] sm:$0xf]
  %v114 = vld [vmem:[%s3 + $0x10] sm:$0xf]
  %v115 = vld [vmem:[%s3 + $0x14] sm:$0xf]
  %v116 = vld [vmem:[%s3 + $0x18] sm:$0xf]
  %v117 = vld [vmem:[%s3 + $0x1c] sm:$0xf]
  %v118 = vld [vmem:[%s3 + $0x20] sm:$0xf]
  %v119 = vld [vmem:[%s3 + $0x24] sm:$0xf]
  %v120 = vld [vmem:[%s3 + $0x28] sm:$0xf]
  %v121 = vld [vmem:[%s3 + $0x2c] sm:$0xf]
  %v122 = vld [vmem:[%s3 + $0x30] sm:$0xf]
  %v123 = vld [vmem:[%s3 + $0x34] sm:$0xf]
  %v124 = vld [vmem:[%s3 + $0x38] sm:$0xf]
  %v125 = vld [vmem:[%s3 + $0x3c] sm:$0xf]
  %v126 = vld [vmem:[%s4] sm:$0x1]
  %v128 = vperm.slane %v126, 0
  %v146 = vunpack.c.l.b16 %v110
  %v147 = vunpack.c.l.b16 %v111
  %v148 = vunpack.c.l.b16 %v112
  %v149 = vunpack.c.l.b16 %v113
  %v150 = vunpack.c.l.b16 %v114
  %v151 = vunpack.c.l.b16 %v115
  %v152 = vunpack.c.l.b16 %v116
  %v153 = vunpack.c.l.b16 %v117
  %v154 = vunpack.c.l.b16 %v118
  %v155 = vunpack.c.l.b16 %v119
  %v156 = vunpack.c.l.b16 %v120
  %v157 = vunpack.c.l.b16 %v121
  %v158 = vunpack.c.l.b16 %v122
  %v159 = vunpack.c.l.b16 %v123
  %v160 = vunpack.c.l.b16 %v124
  %v161 = vunpack.c.l.b16 %v125
  %v162 = vpack.c.b16 %v147, %v146
  %v163 = vpack.c.b16 %v149, %v148
  %v164 = vpack.c.b16 %v151, %v150
  %v165 = vpack.c.b16 %v153, %v152
  %v166 = vpack.c.b16 %v155, %v154
  %v167 = vpack.c.b16 %v157, %v156
  %v168 = vpack.c.b16 %v159, %v158
  %v169 = vpack.c.b16 %v161, %v160
  %178 = vmatpush.bf16.msra.mxu0 %v169
  %179 = vmatpush.bf16.msra.mxu0 %v168
  %180 = vmatpush.bf16.msra.mxu0 %v167
  %181 = vmatpush.bf16.msra.mxu0 %v166
  %182 = vmatpush.bf16.msra.mxu0 %v165
  %183 = vmatpush.bf16.msra.mxu0 %v164
  %184 = vmatpush.bf16.msra.mxu0 %v163
  %185 = vmatpush.bf16.msra.mxu0 %v162
  %186 = vmatmul.bf16.gmra.mxu0 %v109
  %v187 = vpop.f32.mrf.mxu0
  %v188 = vadd.f32 %v128, %v187
  %v189 = vpop.f32.mrf.mxu0
  %190 = vdwg.mxu0
  %v191 = vmax.f32 %v188, 0.0
  %v192 = vpack.c.bf16 %v191, %v191
  %v193 = vld [vmem:[%s5] sm:$0xf]
  %v194 = vld [vmem:[%s5 + $0x4] sm:$0xf]
  %v195 = vld [vmem:[%s5 + $0x8] sm:$0xf]
  %v196 = vld [vmem:[%s5 + $0xc] sm:$0xf]
  %v197 = vld [vmem:[%s5 + $0x10] sm:$0xf]
  %v198 = vld [vmem:[%s5 + $0x14] sm:$0xf]
  %v199 = vld [vmem:[%s5 + $0x18] sm:$0xf]
  %v200 = vld [vmem:[%s5 + $0x1c] sm:$0xf]
  %v201 = vld [vmem:[%s5 + $0x20] sm:$0xf]
  %v202 = vld [vmem:[%s5 + $0x24] sm:$0xf]
  %v203 = vld [vmem:[%s5 + $0x28] sm:$0xf]
  %v204 = vld [vmem:[%s5 + $0x2c] sm:$0xf]
  %v205 = vld [vmem:[%s5 + $0x30] sm:$0xf]
  %v206 = vld [vmem:[%s5 + $0x34] sm:$0xf]
  %v207 = vld [vmem:[%s5 + $0x38] sm:$0xf]
  %v208 = vld [vmem:[%s5 + $0x3c] sm:$0xf]
  %v209 = vld [vmem:[%s6] sm:$0x1]
  %v211 = vperm.slane %v209, 0
  %v229 = vunpack.c.l.b16 %v193
  %v230 = vunpack.c.l.b16 %v194
  %v231 = vunpack.c.l.b16 %v195
  %v232 = vunpack.c.l.b16 %v196
  %v233 = vunpack.c.l.b16 %v197
  %v234 = vunpack.c.l.b16 %v198
  %v235 = vunpack.c.l.b16 %v199
  %v236 = vunpack.c.l.b16 %v200
  %v237 = vunpack.c.l.b16 %v201
  %v238 = vunpack.c.l.b16 %v202
  %v239 = vunpack.c.l.b16 %v203
  %v240 = vunpack.c.l.b16 %v204
  %v241 = vunpack.c.l.b16 %v205
  %v242 = vunpack.c.l.b16 %v206
  %v243 = vunpack.c.l.b16 %v207
  %v244 = vunpack.c.l.b16 %v208
  %v245 = vpack.c.b16 %v230, %v229
  %v246 = vpack.c.b16 %v232, %v231
  %v247 = vpack.c.b16 %v234, %v233
  %v248 = vpack.c.b16 %v236, %v235
  %v249 = vpack.c.b16 %v238, %v237
  %v250 = vpack.c.b16 %v240, %v239
  %v251 = vpack.c.b16 %v242, %v241
  %v252 = vpack.c.b16 %v244, %v243
  %261 = vmatpush.bf16.msra.mxu0 %v252
  %262 = vmatpush.bf16.msra.mxu0 %v251
  %263 = vmatpush.bf16.msra.mxu0 %v250
  %264 = vmatpush.bf16.msra.mxu0 %v249
  %265 = vmatpush.bf16.msra.mxu0 %v248
  %266 = vmatpush.bf16.msra.mxu0 %v247
  %267 = vmatpush.bf16.msra.mxu0 %v246
  %268 = vmatpush.bf16.msra.mxu0 %v245
  %269 = vmatmul.bf16.gmra.mxu0 %v192
  %v270 = vpop.f32.mrf.mxu0
  %v271 = vadd.f32 %v211, %v270
  %v272 = vpop.f32.mrf.mxu0
  %273 = vdwg.mxu0
  %274 = vst [vmem:[%s7] sm:$0xff] %v271
  // Predicated region
  $region30: #{fully_connected_tsl_forward.1} parent=0 // pred_check
    _
  $region31: #{fully_connected_tsl_forward.1} parent=0 // pred_check_branch
    %276 = sbr.rel (0) target = $region33
  $region32: #{fully_connected_tsl_forward.1} parent=0 // pred_region
    _
  $region33: #{fully_connected_tsl_forward.1} parent=0 // pred_fallthru
    _
  // Predicated region
  $region34: #{fully_connected_tsl_forward.1} parent=0 // pred_check
    _
  $region35: #{fully_connected_tsl_forward.1} parent=0 // pred_check_branch
    %278 = sbr.rel (0) target = $region37
  $region36: #{fully_connected_tsl_forward.1} parent=0 // pred_region
    _
  $region37: #{fully_connected_tsl_forward.1} parent=0 // pred_fallthru
    _

</llo_original>
